<compile_context>
chip_gen: v7x
topology: tpu7x:2x2x1
jax: 0.10.0
libtpu: 0.0.40
codegen_flags: <defaults>
</compile_context>

<pallas_src>
import jax
import jax.numpy as jnp
import numpy as np
from jax.experimental import pallas as pl
from jax.experimental.pallas import tpu as pltpu

# base_dict values (synthetic, kept small)
N_FFT = 64
HOP_LENGTH = 16
FREQ = N_FFT // 2 + 1            # onesided bins = 33
RATIO = N_FFT // HOP_LENGTH      # hop-blocks per frame = 4
BASIS_ROWS = 72                  # 2*FREQ = 66 padded to a multiple of 8
TAIL_LANES = 128                 # overlap-tail width (>= RATIO-1, lane aligned)

# TODO(synk): polyphase in-kernel framing assumes HOP_LENGTH divides N_FFT
# (true for this module's config); the generic case would need a gather path.
assert N_FFT % HOP_LENGTH == 0


def _round_up(x, m):
    return ((x + m - 1) // m) * m


def _build_basis_t():
    """Host-side constant: transposed, hann-folded real-DFT basis (72, 64).
    Row 2f = win*cos_f, row 2f+1 = -win*sin_f, rows 66..71 zero."""
    n, f = N_FFT, FREQ
    j = np.arange(n)[None, :].astype(np.float64)
    k = np.arange(f)[:, None].astype(np.float64)
    ang = 2.0 * np.pi * j * k / n
    # periodic hann window (torch.hann_window default) folded into the basis
    win = 0.5 * (1.0 - np.cos(2.0 * np.pi * np.arange(n, dtype=np.float64) / n))
    bt = np.zeros((BASIS_ROWS, n), dtype=np.float32)
    bt[0:2 * f:2, :] = (win[None, :] * np.cos(ang)).astype(np.float32)
    bt[1:2 * f:2, :] = (-(win[None, :]) * np.sin(ang)).astype(np.float32)
    return jnp.asarray(bt)


def _make_kernel(tm):
    def kernel(sig_ref, tail_ref, basis_ref, out_ref):
        # sig_ref:   (HOP, tm)    polyphase columns [i*tm, (i+1)*tm)
        # tail_ref:  (HOP, 128)   polyphase columns [(i+1)*tm, (i+1)*tm + 128)
        # basis_ref: (72, N_FFT)  interleaved, window-folded DFT basis (transposed)
        # out_ref:   (72, tm)     row 2f = real_f, row 2f+1 = imag_f; time on lanes
        ext = jnp.concatenate([sig_ref[...], tail_ref[...]], axis=1)  # (HOP, tm+128)
        # frame tile (N_FFT, tm): rows k*HOP..(k+1)*HOP-1 are columns shifted by k
        frames_t = jnp.concatenate(
            [ext[:, k:k + tm] for k in range(RATIO)], axis=0)          # (N_FFT, tm)
        out_ref[...] = jnp.dot(basis_ref[...], frames_t,
                               preferred_element_type=jnp.float32)
    return kernel


def stft_forward(voice_noise):
    """Equivalent of STFT.forward: torch.stft(x, N_FFT, HOP_LENGTH,
    window=hann_window(N_FFT)).unsqueeze(1) -> (B, 1, F, T, 2)."""
    x = voice_noise.astype(jnp.float32)
    B, L = x.shape
    n, hop, f = N_FFT, HOP_LENGTH, FREQ

    # center=True reflect padding (glue)
    pad = n // 2
    xp = jnp.pad(x, ((0, 0), (pad, pad)), mode="reflect")      # (B, L + n)
    T = 1 + L // hop                                            # frame count

    # polyphase layout: (B, hop, n_blocks); column m holds xp[:, m*hop:(m+1)*hop]
    Lp = xp.shape[1]
    Lp_r = _round_up(Lp, hop)
    if Lp_r != Lp:
        xp = jnp.pad(xp, ((0, 0), (0, Lp_r - Lp)))
    sig_t = jnp.transpose(xp.reshape(B, Lp_r // hop, hop), (0, 2, 1))  # (B,hop,nb)

    # frame-tile size: multiple of 128 (time on lanes), as large as comfortably
    # double-buffers.  grid = (B, n_super) -> >=2 steps for B>=2 or long audio
    # so v7x's two TensorCores both get work.
    T128 = _round_up(T, 128)
    tm = min(2048, T128)
    T_p = _round_up(T, tm)
    n_super = T_p // tm

    need = T_p + tm                     # one spare super-block feeds the tails
    nb = sig_t.shape[2]
    if nb < need:
        sig_t = jnp.pad(sig_t, ((0, 0), (0, 0), (0, need - nb)))
    else:
        sig_t = sig_t[:, :, :need]

    # overlap tails: columns [(i+1)*tm, (i+1)*tm + 128) for each tile i (tiny)
    tails = jnp.transpose(
        sig_t.reshape(B, hop, n_super + 1, tm)[:, :, 1:, :TAIL_LANES],
        (0, 2, 1, 3))                                           # (B,n_super,hop,128)

    basis_t = _build_basis_t()                                  # (72, 64)

    grid_spec = pltpu.PrefetchScalarGridSpec(
        num_scalar_prefetch=0,
        grid=(B, n_super),
        in_specs=[
            pl.BlockSpec((None, hop, tm), lambda b, i: (b, 0, i)),
            pl.BlockSpec((None, None, hop, TAIL_LANES), lambda b, i: (b, i, 0, 0)),
            pl.BlockSpec((BASIS_ROWS, n), lambda b, i: (0, 0)),
        ],
        out_specs=pl.BlockSpec((None, BASIS_ROWS, tm), lambda b, i: (b, 0, i)),
    )

    out = pl.pallas_call(
        _make_kernel(tm),
        out_shape=jax.ShapeDtypeStruct((B, BASIS_ROWS, T_p), jnp.float32),
        grid_spec=grid_spec,
        compiler_params=pltpu.CompilerParams(
            dimension_semantics=("parallel", "parallel"),
            vmem_limit_bytes=32 * 1024 * 1024),
    )(sig_t, tails, basis_t)

    # rows are interleaved (2f = real, 2f+1 = imag): slice + reshape + a single
    # minor transpose gives the PyTorch convention (B, 1, F, T, 2).
    res = out[:, :2 * f, :T].reshape(B, f, 2, T)
    res = jnp.transpose(res, (0, 1, 3, 2))                      # (B, F, T, 2)
    return res[:, None]                                         # (B, 1, F, T, 2)


def _stft_reference(voice_noise):
    """Pure-JAX reference (independent path: gather framing, explicit window,
    separate cos/sin einsums) for correctness checking."""
    x = voice_noise.astype(jnp.float32)
    B, L = x.shape
    n, hop, f = N_FFT, HOP_LENGTH, FREQ
    xp = jnp.pad(x, ((0, 0), (n // 2, n // 2)), mode="reflect")
    n_frames = 1 + L // hop
    idx = (jnp.arange(n_frames) * hop)[:, None] + jnp.arange(n)[None, :]
    frames = xp[:, idx]
    win = 0.5 * (1.0 - jnp.cos(2.0 * jnp.pi * jnp.arange(n) / n))
    fw = frames * win[None, None, :]
    nn_ = np.arange(n)[:, None].astype(np.float64)
    kk = np.arange(f)[None, :].astype(np.float64)
    ang = 2.0 * np.pi * nn_ * kk / n
    cos_b = jnp.asarray(np.cos(ang), dtype=jnp.float32)
    sin_b = jnp.asarray(np.sin(ang), dtype=jnp.float32)
    real = jnp.einsum("btn,nf->btf", fw, cos_b)
    imag = -jnp.einsum("btn,nf->btf", fw, sin_b)
    out = jnp.stack([jnp.transpose(real, (0, 2, 1)),
                     jnp.transpose(imag, (0, 2, 1))], axis=-1)
    return out[:, None]


if __name__ == "__main__":
    key = jax.random.PRNGKey(0)
    B, L = 2, 256                      # small 1-D audio signals
    voice_noise = jax.random.normal(key, (B, L), dtype=jnp.float32)

    fwd = jax.jit(stft_forward)        # fuse the (small) XLA glue around the kernel
    out = jax.block_until_ready(fwd(voice_noise))

    ref = _stft_reference(voice_noise)
    assert out.shape == (B, 1, FREQ, 1 + L // HOP_LENGTH, 2), out.shape
    np.testing.assert_allclose(np.asarray(out), np.asarray(ref),
                               rtol=1e-4, atol=1e-4)
    print("KERNEL_OK")
</pallas_src>

<mosaic_0001>
module attributes {stable_mosaic.version = 11 : i64} {
  func.func @kernel(%arg0: i32, %arg1: i32, %arg2: memref<1x16x128xf32, #tpu.memory_space<vmem>>, %arg3: memref<1x1x16x128xf32, #tpu.memory_space<vmem>>, %arg4: memref<72x64xf32, #tpu.memory_space<vmem>>, %arg5: memref<1x72x128xf32, #tpu.memory_space<vmem>>) attributes {dimension_semantics = [#tpu.dimension_semantics<parallel>, #tpu.dimension_semantics<parallel>], iteration_bounds = array<i64: 2, 1>, scalar_prefetch = 0 : i64, scratch_operands = 0 : i64, tpu.core_type = #tpu.core_type<tc>, window_params = [{transform_indices = @transform_0, window_bounds = array<i64: 1, 16, 128>}, {transform_indices = @transform_1, window_bounds = array<i64: 1, 1, 16, 128>}, {pipeline_mode = #tpu.pipeline_mode<synchronous>, transform_indices = @transform_2, window_bounds = array<i64: 72, 64>}, {transform_indices = @transform_3, window_bounds = array<i64: 1, 72, 128>}]} {
    %c0 = arith.constant 0 : index
    %c0_0 = arith.constant 0 : index
    %c0_1 = arith.constant 0 : index
    %0 = vector.load %arg2[%c0, %c0_0, %c0_1] : memref<1x16x128xf32, #tpu.memory_space<vmem>>, vector<1x16x128xf32>
    %1 = vector.shape_cast %0 : vector<1x16x128xf32> to vector<16x128xf32>
    %c0_2 = arith.constant 0 : index
    %c0_3 = arith.constant 0 : index
    %c0_4 = arith.constant 0 : index
    %c0_5 = arith.constant 0 : index
    %2 = vector.load %arg3[%c0_2, %c0_3, %c0_4, %c0_5] : memref<1x1x16x128xf32, #tpu.memory_space<vmem>>, vector<1x1x16x128xf32>
    %3 = vector.shape_cast %2 : vector<1x1x16x128xf32> to vector<16x128xf32>
    %4 = tpu.concatenate %1, %3 in 1 : vector<16x128xf32>, vector<16x128xf32> -> vector<16x256xf32>
    %5 = vector.extract_strided_slice %4 {offsets = [0, 0], sizes = [16, 128], strides = [1, 1]} : vector<16x256xf32> to vector<16x128xf32>
    %6 = vector.extract_strided_slice %4 {offsets = [0, 1], sizes = [16, 128], strides = [1, 1]} : vector<16x256xf32> to vector<16x128xf32>
    %7 = vector.extract_strided_slice %4 {offsets = [0, 2], sizes = [16, 128], strides = [1, 1]} : vector<16x256xf32> to vector<16x128xf32>
    %8 = vector.extract_strided_slice %4 {offsets = [0, 3], sizes = [16, 128], strides = [1, 1]} : vector<16x256xf32> to vector<16x128xf32>
    %9 = tpu.concatenate %5, %6, %7, %8 in 0 : vector<16x128xf32>, vector<16x128xf32>, vector<16x128xf32>, vector<16x128xf32> -> vector<64x128xf32>
    %c0_6 = arith.constant 0 : index
    %c0_7 = arith.constant 0 : index
    %10 = vector.load %arg4[%c0_6, %c0_7] : memref<72x64xf32, #tpu.memory_space<vmem>>, vector<72x64xf32>
    %cst = arith.constant dense<0.000000e+00> : vector<72x128xf32>
    %11 = tpu.matmul %10, %9, %cst {dimension_numbers = #tpu.dot_dimension_numbers<[1], [0], [0], [1], [0, 0, 1, 1], [], []>} : vector<72x64xf32>, vector<64x128xf32>, vector<72x128xf32> -> vector<72x128xf32>
    %c0_8 = arith.constant 0 : index
    %c0_9 = arith.constant 0 : index
    %c0_10 = arith.constant 0 : index
    %12 = vector.load %arg5[%c0_8, %c0_9, %c0_10] : memref<1x72x128xf32, #tpu.memory_space<vmem>>, vector<1x72x128xf32>
    %13 = vector.shape_cast %12 : vector<1x72x128xf32> to vector<72x128xf32>
    %14 = vector.shape_cast %11 : vector<72x128xf32> to vector<1x72x128xf32>
    tpu.vector_store %arg5[%c0_8, %c0_9, %c0_10], %14 {strides = array<i32>} : memref<1x72x128xf32, #tpu.memory_space<vmem>>, vector<1x72x128xf32>,
    return
  }
  func.func @transform_0(%arg0: i32, %arg1: i32) -> (i32, i32, i32) {
    %c0_i32 = arith.constant 0 : i32
    %c0_i32_0 = arith.constant 0 : i32
    return %arg0, %c0_i32, %arg1 : i32, i32, i32
  }
  func.func @transform_1(%arg0: i32, %arg1: i32) -> (i32, i32, i32, i32) {
    %c0_i32 = arith.constant 0 : i32
    %c0_i32_0 = arith.constant 0 : i32
    %c0_i32_1 = arith.constant 0 : i32
    return %arg0, %arg1, %c0_i32, %c0_i32_0 : i32, i32, i32, i32
  }
  func.func @transform_2(%arg0: i32, %arg1: i32) -> (i32, i32) {
    %c0_i32 = arith.constant 0 : i32
    %c0_i32_0 = arith.constant 0 : i32
    %c0_i32_1 = arith.constant 0 : i32
    return %c0_i32, %c0_i32_0 : i32, i32
  }
  func.func @transform_3(%arg0: i32, %arg1: i32) -> (i32, i32, i32) {
    %c0_i32 = arith.constant 0 : i32
    %c0_i32_0 = arith.constant 0 : i32
    return %arg0, %c0_i32, %arg1 : i32, i32, i32
  }
}

</mosaic_0001>

<llo_original>
// kernel: stft_forward.1
$region0: #{stft_forward.1}
  #allocation0 [shape = 'u32[]', space=smem, size = 0x4, offset = 0x4, fixed_abs, tag = 'smem constant byte address 0x4 - core index']
  #allocation1 [shape = 'u32[144,128]{1,0:T(1,128)}', space=vmem, size = 0x12000, scoped, tag = 'internal scratch']
  %s0 = inlined_call_operand.vmem [shape: f32[2,16,256], index: 0, kind: input, shape index: {}]
  %s1 = inlined_call_operand.vmem [shape: f32[2,1,16,128], index: 1, kind: input, shape index: {}]
  %s2 = inlined_call_operand.vmem [shape: f32[72,64], index: 2, kind: input, shape index: {}]
  %s3 = inlined_call_operand.vmem [shape: f32[2,72,128], index: 3, kind: output, shape index: {}]
  %s4 = sld [smem:[#allocation0]]
  $region83: #{stft_forward.1} parent=0
    _
  %s6 = ssub.s32 1, %s4
  %s7 = scalar_select 0, %s6, %s4
  $region1: #{stft_forward.1} parent=0
    #allocation2 [shape = 'u8[16384]{0}', space=vmem, size = 0x4000, scoped, tag = 'input window, operand 0']
    loop: start=0, step=1, limit=4
    $region2: #{stft_forward.1} parent=1 // loop_pre_header
      _
    $region3: #{stft_forward.1} parent=1 // loop_header
      %s9 = sphi 0, %s13
      %p10 = scmp.ge.s32.totalorder %s9, 4
      %s16 = sphi 0, %s28
      %s17 = sphi 0, %s24
      %s18 = sphi 0, %s16
      %s19 = sphi 0, %s17
      %s20 = sphi 0, %s18
      %s21 = sphi 0, %s19
      %s33 = sphi 0, %s35
      %s36 = sphi 0, %s33
      %s37 = sphi 0, %s36
      %s53 = sphi 0, %s37
      %s61 = sphi 0, %s63
      %s64 = sphi 0, %s61
      %s65 = sphi 0, %s64
      %s81 = sphi 0, %s65
      %s85 = sphi 0, %s85
      %s87 = sphi 0, %s85
      %s88 = sphi 0, %s87
      %s102 = sphi 0, %s88
      %s110 = sphi 0, %s112
      %s113 = sphi 0, %s110
      %s114 = sphi 0, %s113
      %s130 = sphi 0, %s114
    $region4: #{stft_forward.1} parent=1 // loop_header_branch
      %12 = sbr.rel (%p10) target = $region8
    $region5: #{stft_forward.1} parent=1 // loop_body
      %s14 = ssub.s32 %s9, 1
      %s15 = ssub.s32 %s9, 2
      %s22 = sadd.s32 1, %s17
      %p23 = scmp.ge.s32.totalorder %s22, 1
      %s24 = scalar_select %p23, 0, %s22
      %s25 = sadd.s32 1, %s16
      %s26 = scalar_select %p23, %s25, %s16
      %p27 = scmp.ge.s32.totalorder %s26, 2
      %s28 = scalar_select %p27, 0, %s26
      %s29 = ssub.s32 %s16, %s28
      %s30 = ssub.s32 %s17, %s24
      %s31 = sor.u32 %s29, %s30
      %p32 = scmp.eq.s32.totalorder %s31, 0
      %s34 = sadd.s32 %s33, 1
      %s35 = scalar_select %p32, %s33, %s34
      %p38 = pneg %p32
      %p39 = scmp.eq.s32.totalorder %s9, 1
      %p40 = por %p38, %p39
      %p41 = scmp.ne.s32.totalorder %s33, %s36
      %p42 = scmp.eq.s32.totalorder %s9, 0
      %p43 = por %p41, %p42
      %p44 = scmp.ne.s32.totalorder %s33, %s36
      %p45 = scmp.eq.s32.totalorder %s14, 1
      %p46 = por %p44, %p45
      %p47 = scmp.ne.s32.totalorder %s36, %s37
      %p48 = scmp.eq.s32.totalorder %s14, 0
      %p49 = por %p47, %p48
      %p50 = scmp.ne.s32.totalorder %s36, %s37
      %p51 = scmp.eq.s32.totalorder %s15, 1
      %p52 = por %p50, %p51
      %p54 = scmp.ne.s32.totalorder %s37, %s53
      %p55 = scmp.eq.s32.totalorder %s15, 0
      %p56 = por %p54, %p55
      %s57 = ssub.s32 %s16, %s28
      %s58 = ssub.s32 %s17, %s24
      %s59 = sor.u32 %s57, %s58
      %p60 = scmp.eq.s32.totalorder %s59, 0
      %s62 = sadd.s32 %s61, 1
      %s63 = scalar_select %p60, %s61, %s62
      %p66 = pneg %p60
      %p67 = scmp.eq.s32.totalorder %s9, 1
      %p68 = por %p66, %p67
      %p69 = scmp.ne.s32.totalorder %s61, %s64
      %p70 = scmp.eq.s32.totalorder %s9, 0
      %p71 = por %p69, %p70
      %p72 = scmp.ne.s32.totalorder %s61, %s64
      %p73 = scmp.eq.s32.totalorder %s14, 1
      %p74 = por %p72, %p73
      %p75 = scmp.ne.s32.totalorder %s64, %s65
      %p76 = scmp.eq.s32.totalorder %s14, 0
      %p77 = por %p75, %p76
      %p78 = scmp.ne.s32.totalorder %s64, %s65
      %p79 = scmp.eq.s32.totalorder %s15, 1
      %p80 = por %p78, %p79
      %p82 = scmp.ne.s32.totalorder %s65, %s81
      %p83 = scmp.eq.s32.totalorder %s15, 0
      %p84 = por %p82, %p83
      %s86 = sadd.s32 %s85, 1
      %p89 = scmp.eq.s32.totalorder %s9, 1
      %p90 = scmp.ne.s32.totalorder %s85, %s87
      %p91 = scmp.eq.s32.totalorder %s9, 0
      %p92 = por %p90, %p91
      %p93 = scmp.ne.s32.totalorder %s85, %s87
      %p94 = scmp.eq.s32.totalorder %s14, 1
      %p95 = por %p93, %p94
      %p96 = scmp.ne.s32.totalorder %s87, %s88
      %p97 = scmp.eq.s32.totalorder %s14, 0
      %p98 = por %p96, %p97
      %p99 = scmp.ne.s32.totalorder %s87, %s88
      %p100 = scmp.eq.s32.totalorder %s15, 1
      %p101 = por %p99, %p100
      %p103 = scmp.ne.s32.totalorder %s88, %s102
      %p104 = scmp.eq.s32.totalorder %s15, 0
      %p105 = por %p103, %p104
      %s106 = ssub.s32 %s16, %s28
      %s107 = ssub.s32 %s17, %s24
      %s108 = sor.u32 %s106, %s107
      %p109 = scmp.eq.s32.totalorder %s108, 0
      %s111 = sadd.s32 %s110, 1
      %s112 = scalar_select %p109, %s110, %s111
      %p115 = pneg %p109
      %p116 = scmp.eq.s32.totalorder %s9, 1
      %p117 = por %p115, %p116
      %p118 = scmp.ne.s32.totalorder %s110, %s113
      %p119 = scmp.eq.s32.totalorder %s9, 0
      %p120 = por %p118, %p119
      %p121 = scmp.ne.s32.totalorder %s110, %s113
      %p122 = scmp.eq.s32.totalorder %s14, 1
      %p123 = por %p121, %p122
      %p124 = scmp.ne.s32.totalorder %s113, %s114
      %p125 = scmp.eq.s32.totalorder %s14, 0
      %p126 = por %p124, %p125
      %p127 = scmp.ne.s32.totalorder %s113, %s114
      %p128 = scmp.eq.s32.totalorder %s15, 1
      %p129 = por %p127, %p128
      %p131 = scmp.ne.s32.totalorder %s114, %s130
      %p132 = scmp.eq.s32.totalorder %s15, 0
      %p133 = por %p131, %p132
      %p134 = scmp.le.s32.totalorder 1, %s9
      %p135 = scmp.lt.s32.totalorder %s9, 3
      %p136 = pnand %p134, %p135
      %p137 = pneg %p136
      // Predicated region
      $region9: #{stft_forward.1} parent=5 // pred_check
        _
      $region10: #{stft_forward.1} parent=5 // pred_check_branch
        %139 = sbr.rel (%p136) target = $region12
      $region11: #{stft_forward.1} parent=5 // pred_region
        %s140 = ssub.s32 %s9, 1
        // Predicated region
        $region13: #{stft_forward.1} parent=11 // pred_check
          %p141 = pneg %p98
        $region14: #{stft_forward.1} parent=11 // pred_check_branch
          %143 = sbr.rel (%p141) target = $region16
        $region15: #{stft_forward.1} parent=11 // pred_region
          _
        $region16: #{stft_forward.1} parent=11 // pred_fallthru
          _
      $region12: #{stft_forward.1} parent=5 // pred_fallthru
        _
      %p144 = scmp.lt.s32.totalorder %s9, 2
      // Predicated region
      $region17: #{stft_forward.1} parent=5 // pred_check
        %p145 = pneg %p144
      $region18: #{stft_forward.1} parent=5 // pred_check_branch
        %147 = sbr.rel (%p145) target = $region20
      $region19: #{stft_forward.1} parent=5 // pred_region
        // Predicated region
        $region21: #{stft_forward.1} parent=19 // pred_check
          %p148 = pneg %p43
        $region22: #{stft_forward.1} parent=19 // pred_check_branch
          %150 = sbr.rel (%p148) target = $region24
        $region23: #{stft_forward.1} parent=19 // pred_region
          %s151 = sand.u32 %s33, 1
          %s152 = sand.u32 %s33, 1
          %s153 = smul.addr %s152, 16
          %s154 = scalar_lea.vmem [#allocation2], %s153
          %s155 = smul.addr %s16, 4
          %s156 = sadd.s32 %s17, %s155
          %s157 = smul.addr %s156, 8
          %s158 = scalar_lea.vmem %s0, %s157
          // Predicated region
          $region25: #{stft_forward.1} parent=23 // pred_check
            _
          $region26: #{stft_forward.1} parent=23 // pred_check_branch
            %160 = sbr.rel (0) target = $region28
          $region27: #{stft_forward.1} parent=23 // pred_region
            // Predicated region
            $region29: #{stft_forward.1} parent=27 // pred_check
              _
            $region30: #{stft_forward.1} parent=27 // pred_check_branch
              %162 = sbr.rel (0) target = $region32
            $region31: #{stft_forward.1} parent=27 // pred_region
              // Predicated region
              $region44: #{stft_forward.1} parent=31 // pred_check
                _
              $region45: #{stft_forward.1} parent=31 // pred_check_branch
                %179 = sbr.rel (0) target = $region47
              $region46: #{stft_forward.1} parent=31 // pred_region
                loop: start=0, step=1, limit=1
                $region48: #{stft_forward.1} parent=46 // loop_pre_header
                  _
                $region49: #{stft_forward.1} parent=46 // loop_header
                  %s181 = sphi 0, %s185
                  %p182 = scmp.ge.s32.totalorder %s181, 1
                  %s186 = sphi %s158, %s158
                  %s187 = sphi %s154, %s154
                $region50: #{stft_forward.1} parent=46 // loop_header_branch
                  %184 = sbr.rel (%p182) target = $region54
                $region51: #{stft_forward.1} parent=46 // loop_body
                  %v188 = vld [vmem:[%s186] sm:$0xff]
                  %189 = vst [vmem:[%s187] sm:$0xff] %v188
                  %v190 = vld [vmem:[%s186 + $0x10] sm:$0xff]
                  %191 = vst [vmem:[%s187 + $0x8] sm:$0xff] %v190
                $region52: #{stft_forward.1} parent=46 // loop_footer
                  %s185 = sadd.s32 1, %s181
                $region53: #{stft_forward.1} parent=46 // loop_footer_branch
                  %180 = sbr.rel target = $region49
                $region54: #{stft_forward.1} parent=46 // loop_exit
                  _
              $region47: #{stft_forward.1} parent=31 // pred_fallthru
                _
              // Predicated region
              $region55: #{stft_forward.1} parent=31 // pred_check
                _
              $region56: #{stft_forward.1} parent=31 // pred_check_branch
                %193 = sbr.rel target = $region58
              $region57: #{stft_forward.1} parent=31 // pred_region
                _
              $region58: #{stft_forward.1} parent=31 // pred_fallthru
                _
            $region32: #{stft_forward.1} parent=27 // pred_fallthru
              _
            // Predicated region
            $region33: #{stft_forward.1} parent=27 // pred_check
              _
            $region34: #{stft_forward.1} parent=27 // pred_check_branch
              %164 = sbr.rel target = $region36
            $region35: #{stft_forward.1} parent=27 // pred_region
              loop: start=0, step=1, limit=1
              $region37: #{stft_forward.1} parent=35 // loop_pre_header
                _
              $region38: #{stft_forward.1} parent=35 // loop_header
                %s167 = sphi 0, %s171
                %p168 = scmp.ge.s32.totalorder %s167, 1
                %s172 = sphi %s158, %s158
                %s173 = sphi %s154, %s154
              $region39: #{stft_forward.1} parent=35 // loop_header_branch
                %170 = sbr.rel (%p168) target = $region43
              $region40: #{stft_forward.1} parent=35 // loop_body
                %v174 = vld [vmem:[%s172] sm:$0xff]
                %175 = vst [vmem:[%s173] sm:$0xff] %v174
                %v176 = vld [vmem:[%s172 + $0x10] sm:$0xff]
                %177 = vst [vmem:[%s173 + $0x8] sm:$0xff] %v176
              $region41: #{stft_forward.1} parent=35 // loop_footer
                %s171 = sadd.s32 1, %s167
              $region42: #{stft_forward.1} parent=35 // loop_footer_branch
                %166 = sbr.rel target = $region38
              $region43: #{stft_forward.1} parent=35 // loop_exit
                _
            $region36: #{stft_forward.1} parent=27 // pred_fallthru
              _
          $region28: #{stft_forward.1} parent=23 // pred_fallthru
            _
          %194 = vnop
        $region24: #{stft_forward.1} parent=19 // pred_fallthru
          _
        // Predicated region
        $region59: #{stft_forward.1} parent=19 // pred_check
          %p195 = pneg %p71
        $region60: #{stft_forward.1} parent=19 // pred_check_branch
          %197 = sbr.rel (%p195) target = $region62
        $region61: #{stft_forward.1} parent=19 // pred_region
          %p198 = scmp.lt.s32.totalorder %s16, 1
          %s199 = scalar_select %p198, %s16, 1
          %p200 = scmp.lt.s32.totalorder %s17, 0
          %s201 = scalar_select %p200, %s17, 0
          %s202 = smul.addr %s201, 2
          %s203 = smul.addr %s199, 2
          %s204 = sadd.s32 %s202, %s203
          %s205 = smul.addr %s204, 8
          %s206 = scalar_lea.vmem %s1, %s205
        $region62: #{stft_forward.1} parent=19 // pred_fallthru
          _
      $region20: #{stft_forward.1} parent=5 // pred_fallthru
        _
      %p207 = scmp.le.s32.totalorder 1, %s9
      %p208 = scmp.lt.s32.totalorder %s9, 3
      %p209 = pnand %p207, %p208
      %p210 = pneg %p209
      // Predicated region
      $region63: #{stft_forward.1} parent=5 // pred_check
        _
      $region64: #{stft_forward.1} parent=5 // pred_check_branch
        %212 = sbr.rel (%p209) target = $region66
      $region65: #{stft_forward.1} parent=5 // pred_region
        %s213 = ssub.s32 %s9, 1
        %s214 = sand.u32 %s36, 1
        %s215 = sand.u32 %s36, 1
        %s216 = smul.addr %s215, 16
        %s217 = scalar_lea.vmem [#allocation2], %s216
        // Predicated region
        $region67: #{stft_forward.1} parent=65 // pred_check
          %p218 = pneg %p49
        $region68: #{stft_forward.1} parent=65 // pred_check_branch
          %220 = sbr.rel (%p218) target = $region70
        $region69: #{stft_forward.1} parent=65 // pred_region
          _
        $region70: #{stft_forward.1} parent=65 // pred_fallthru
          _
        %s221 = sand.u32 %s36, 1
        %s222 = sand.u32 %s36, 1
        %s223 = smul.addr %s222, 16
        %s224 = scalar_lea.vmem [#allocation2], %s223
        %p225 = pneg %p49
        %p226 = pneg %p46
        %p227 = scmp.lt.s32.totalorder %s18, 1
        %s228 = scalar_select %p227, %s18, 1
        %p229 = scmp.lt.s32.totalorder %s19, 0
        %s230 = scalar_select %p229, %s19, 0
        %s231 = smul.addr %s230, 2
        %s232 = smul.addr %s228, 2
        %s233 = sadd.s32 %s231, %s232
        %s234 = smul.addr %s233, 8
        %s235 = scalar_lea.vmem %s1, %s234
        %p236 = pneg %p77
        %p237 = pneg %p74
        %p238 = pneg %p98
        %p239 = pneg %p95
        %p240 = pneg %p126
        %p241 = pneg %p123
        %p242 = scmp.lt.s32.totalorder %s18, 1
        %s243 = scalar_select %p242, %s18, 1
        %p244 = scmp.lt.s32.totalorder %s19, 0
        %s245 = scalar_select %p244, %s19, 0
        %s246 = smul.addr %s243, 9
        %s247 = sadd.s32 %s245, %s246
        %s248 = smul.addr %s247, 8
        %s249 = scalar_lea.vmem %s3, %s248
        %p250 = scmp.lt.s32.totalorder %s18, 1
        %s251 = scalar_select %p250, %s18, 1
        %p252 = scmp.lt.s32.totalorder %s19, 0
        %s253 = scalar_select %p252, %s19, 0
        %s254 = smul.addr %s253, 2
        %s255 = smul.addr %s251, 2
        %s256 = sadd.s32 %s254, %s255
        %s257 = smul.addr %s256, 8
        %s258 = scalar_lea.vmem %s1, %s257
        %p259 = scmp.lt.s32.totalorder %s18, 1
        %s260 = scalar_select %p259, %s18, 1
        %p261 = scmp.lt.s32.totalorder %s19, 0
        %s262 = scalar_select %p261, %s19, 0
        %s263 = smul.addr %s260, 9
        %s264 = sadd.s32 %s262, %s263
        %s265 = smul.addr %s264, 8
        %s266 = scalar_lea.vmem %s3, %s265
        %v267 = vld [vmem:[%s217] sm:$0xff]
        %v268 = vld [vmem:[%s217 + $0x8] sm:$0xff]
        %v269 = vld [vmem:[%s258] sm:$0xff]
        %v270 = vld [vmem:[%s258 + $0x8] sm:$0xff]
        %275 = vrot.lane.b32.xlu0 %v267, 127
        %v276 = vpop.permute.xlu0 %275
        %277 = vrot.lane.b32.xlu0 %v269, 127
        %v278 = vpop.permute.xlu0 %277
        %279 = vrot.lane.b32.xlu0 %v268, 127
        %v280 = vpop.permute.xlu0 %279
        %281 = vrot.lane.b32.xlu0 %v270, 127
        %v282 = vpop.permute.xlu0 %281
        %vm283 = vcmask 1039360
        %v284 = vsel %vm283, %v276, %v278
        %v285 = vsel %vm283, %v280, %v282
        %288 = vrot.lane.b32.xlu0 %v267, 126
        %v289 = vpop.permute.xlu0 %288
        %290 = vrot.lane.b32.xlu0 %v269, 126
        %v291 = vpop.permute.xlu0 %290
        %292 = vrot.lane.b32.xlu0 %v268, 126
        %v293 = vpop.permute.xlu0 %292
        %294 = vrot.lane.b32.xlu0 %v270, 126
        %v295 = vpop.permute.xlu0 %294
        %vm296 = vcmask 1031168
        %v297 = vsel %vm296, %v289, %v291
        %v298 = vsel %vm296, %v293, %v295
        %301 = vrot.lane.b32.xlu0 %v267, 125
        %v302 = vpop.permute.xlu0 %301
        %303 = vrot.lane.b32.xlu0 %v269, 125
        %v304 = vpop.permute.xlu0 %303
        %305 = vrot.lane.b32.xlu0 %v268, 125
        %v306 = vpop.permute.xlu0 %305
        %307 = vrot.lane.b32.xlu0 %v270, 125
        %v308 = vpop.permute.xlu0 %307
        %vm309 = vcmask 1022976
        %v310 = vsel %vm309, %v302, %v304
        %v311 = vsel %vm309, %v306, %v308
        %v314 = vld [vmem:[%s2] sm:$0xff]
        %v315 = vld [vmem:[%s2 + $0x8] sm:$0xff]
        %v316 = vld [vmem:[%s2 + $0x10] sm:$0xff]
        %v317 = vld [vmem:[%s2 + $0x18] sm:$0xff]
        %v318 = vld [vmem:[%s2 + $0x20] sm:$0xff]
        %v319 = vld [vmem:[%s2 + $0x28] sm:$0xff]
        %v320 = vld [vmem:[%s2 + $0x30] sm:$0xff]
        %v321 = vld [vmem:[%s2 + $0x38] sm:$0xff]
        %v322 = vld [vmem:[%s2 + $0x40] sm:$0xff]
        %vm323 = vcmask 523264
        %v325 = vsel %vm323, %v314, 0
        %v328 = vsel %vm323, %v315, 0
        %v331 = vsel %vm323, %v316, 0
        %v334 = vsel %vm323, %v317, 0
        %v337 = vsel %vm323, %v318, 0
        %v340 = vsel %vm323, %v319, 0
        %v343 = vsel %vm323, %v320, 0
        %v346 = vsel %vm323, %v321, 0
        %v349 = vsel %vm323, %v322, 0
        %351 = vmatprep.subr.mxu0 0.0
        %352 = vmatpush1.msra.mxu0 %v267
        %353 = vmatprep.subr.mxu0 0.0
        %354 = vmatpush1.msra.mxu0 %v268
        %355 = vmatprep.subr.mxu0 0.0
        %356 = vmatpush1.msra.mxu0 %v284
        %357 = vmatprep.subr.mxu0 0.0
        %358 = vmatpush1.msra.mxu0 %v285
        %359 = vmatprep.subr.mxu0 0.0
        %360 = vmatpush1.msra.mxu0 %v297
        %361 = vmatprep.subr.mxu0 0.0
        %362 = vmatpush1.msra.mxu0 %v298
        %363 = vmatprep.subr.mxu0 0.0
        %364 = vmatpush1.msra.mxu0 %v310
        %365 = vmatprep.subr.mxu0 0.0
        %366 = vmatpush1.msra.mxu0 %v311
        %367 = vmatprep.subr.mxu0 0.0
        %368 = vmatpush1.msra.mxu0 0.0
        %369 = vmatprep.subr.mxu0 0.0
        %370 = vmatpush1.msra.mxu0 0.0
        %371 = vmatprep.subr.mxu0 0.0
        %372 = vmatpush1.msra.mxu0 0.0
        %373 = vmatprep.subr.mxu0 0.0
        %374 = vmatpush1.msra.mxu0 0.0
        %375 = vmatprep.subr.mxu0 0.0
        %376 = vmatpush1.msra.mxu0 0.0
        %377 = vmatprep.subr.mxu0 0.0
        %378 = vmatpush1.msra.mxu0 0.0
        %379 = vmatprep.subr.mxu0 0.0
        %380 = vmatpush1.msra.mxu0 0.0
        %381 = vmatprep.subr.mxu0 0.0
        %382 = vmatpush1.msra.mxu0 0.0
        %383 = vmatprep.subr.mxu0 0.0
        %384 = vmatpush1.msra.mxu0 0.0
        %385 = vmatprep.subr.mxu0 0.0
        %386 = vmatpush1.msra.mxu0 0.0
        %387 = vmatprep.subr.mxu0 0.0
        %388 = vmatpush1.msra.mxu0 0.0
        %389 = vmatprep.subr.mxu0 0.0
        %390 = vmatpush1.msra.mxu0 0.0
        %391 = vmatprep.subr.mxu0 0.0
        %392 = vmatpush1.msra.mxu0 0.0
        %393 = vmatprep.subr.mxu0 0.0
        %394 = vmatpush1.msra.mxu0 0.0
        %395 = vmatprep.subr.mxu0 0.0
        %396 = vmatpush1.msra.mxu0 0.0
        %397 = vmatprep.subr.mxu0 0.0
        %398 = vmatpush1.msra.mxu0 0.0
        %399 = vmatprep.subr.mxu0 0.0
        %400 = vmatpush1.msra.mxu0 0.0
        %401 = vmatprep.subr.mxu0 0.0
        %402 = vmatpush1.msra.mxu0 0.0
        %403 = vmatprep.subr.mxu0 0.0
        %404 = vmatpush1.msra.mxu0 0.0
        %405 = vmatprep.subr.mxu0 0.0
        %406 = vmatpush1.msra.mxu0 0.0
        %407 = vmatprep.subr.mxu0 0.0
        %408 = vmatpush1.msra.mxu0 0.0
        %409 = vmatprep.subr.mxu0 0.0
        %410 = vmatpush1.msra.mxu0 0.0
        %411 = vmatprep.subr.mxu0 0.0
        %412 = vmatpush1.msra.mxu0 0.0
        %413 = vmatprep.subr.mxu0 0.0
        %414 = vmatpush1.msra.mxu0 0.0
        %415 = vmatprep.mubr.f32.mxu0 0.0
        %416 = vmatmul.mubr.f32.gmra.mrb[0].mxu0 %v325
        %v417 = vpop.f32.mrb[0].mxu0
        %v418 = vadd.f32 0.0, %v417
        %v419 = vpop.f32.mrb[0].mxu0
        %420 = vmatprep.mubr.f32.mxu0 0.0
        %421 = vmatmul.mubr.f32.gmra.mrb[0].mxu0 %v328
        %v422 = vpop.f32.mrb[0].mxu0
        %v423 = vadd.f32 0.0, %v422
        %v424 = vpop.f32.mrb[0].mxu0
        %425 = vmatprep.mubr.f32.mxu0 0.0
        %426 = vmatmul.mubr.f32.gmra.mrb[0].mxu0 %v331
        %v427 = vpop.f32.mrb[0].mxu0
        %v428 = vadd.f32 0.0, %v427
        %v429 = vpop.f32.mrb[0].mxu0
        %430 = vmatprep.mubr.f32.mxu0 0.0
        %431 = vmatmul.mubr.f32.gmra.mrb[0].mxu0 %v334
        %v432 = vpop.f32.mrb[0].mxu0
        %v433 = vadd.f32 0.0, %v432
        %v434 = vpop.f32.mrb[0].mxu0
        %435 = vmatprep.mubr.f32.mxu0 0.0
        %436 = vmatmul.mubr.f32.gmra.mrb[0].mxu0 %v337
        %v437 = vpop.f32.mrb[0].mxu0
        %v438 = vadd.f32 0.0, %v437
        %v439 = vpop.f32.mrb[0].mxu0
        %440 = vmatprep.mubr.f32.mxu0 0.0
        %441 = vmatmul.mubr.f32.gmra.mrb[0].mxu0 %v340
        %v442 = vpop.f32.mrb[0].mxu0
        %v443 = vadd.f32 0.0, %v442
        %v444 = vpop.f32.mrb[0].mxu0
        %445 = vmatprep.mubr.f32.mxu0 0.0
        %446 = vmatmul.mubr.f32.gmra.mrb[0].mxu0 %v343
        %v447 = vpop.f32.mrb[0].mxu0
        %v448 = vadd.f32 0.0, %v447
        %v449 = vpop.f32.mrb[0].mxu0
        %450 = vmatprep.mubr.f32.mxu0 0.0
        %451 = vmatmul.mubr.f32.gmra.mrb[0].mxu0 %v346
        %v452 = vpop.f32.mrb[0].mxu0
        %v453 = vadd.f32 0.0, %v452
        %v454 = vpop.f32.mrb[0].mxu0
        %455 = vmatprep.mubr.f32.mxu0 0.0
        %456 = vmatmul.mubr.f32.gmra.mrb[0].mxu0 %v349
        %v457 = vpop.f32.mrb[0].mxu0
        %v458 = vadd.f32 0.0, %v457
        %v459 = vpop.f32.mrb[0].mxu0
        %460 = vdwg.mxu0
        %461 = vst [vmem:[%s266] sm:$0xff] %v418
        %462 = vst [vmem:[%s266 + $0x8] sm:$0xff] %v423
        %463 = vst [vmem:[%s266 + $0x10] sm:$0xff] %v428
        %464 = vst [vmem:[%s266 + $0x18] sm:$0xff] %v433
        %465 = vst [vmem:[%s266 + $0x20] sm:$0xff] %v438
        %466 = vst [vmem:[%s266 + $0x28] sm:$0xff] %v443
        %467 = vst [vmem:[%s266 + $0x30] sm:$0xff] %v448
        %468 = vst [vmem:[%s266 + $0x38] sm:$0xff] %v453
        %469 = vst [vmem:[%s266 + $0x40] sm:$0xff] %v458
        %p470 = scmp.lt.s32.totalorder %s18, 1
        %s471 = scalar_select %p470, %s18, 1
        %p472 = scmp.lt.s32.totalorder %s19, 0
        %s473 = scalar_select %p472, %s19, 0
        %s474 = smul.addr %s471, 9
        %s475 = sadd.s32 %s473, %s474
        %s476 = smul.addr %s475, 8
        %s477 = scalar_lea.vmem %s3, %s476
        // Predicated region
        $region71: #{stft_forward.1} parent=65 // pred_check
          %p478 = pneg %p123
        $region72: #{stft_forward.1} parent=65 // pred_check_branch
          %480 = sbr.rel (%p478) target = $region74
        $region73: #{stft_forward.1} parent=65 // pred_region
          _
        $region74: #{stft_forward.1} parent=65 // pred_fallthru
          _
      $region66: #{stft_forward.1} parent=5 // pred_fallthru
        _
      %p481 = scmp.le.s32.totalorder 2, %s9
      // Predicated region
      $region75: #{stft_forward.1} parent=5 // pred_check
        %p482 = pneg %p481
      $region76: #{stft_forward.1} parent=5 // pred_check_branch
        %484 = sbr.rel (%p482) target = $region78
      $region77: #{stft_forward.1} parent=5 // pred_region
        %s485 = ssub.s32 %s9, 2
        // Predicated region
        $region79: #{stft_forward.1} parent=77 // pred_check
          %p486 = pneg %p129
        $region80: #{stft_forward.1} parent=77 // pred_check_branch
          %488 = sbr.rel (%p486) target = $region82
        $region81: #{stft_forward.1} parent=77 // pred_region
          %p489 = scmp.lt.s32.totalorder %s20, 1
          %s490 = scalar_select %p489, %s20, 1
          %p491 = scmp.lt.s32.totalorder %s21, 0
          %s492 = scalar_select %p491, %s21, 0
          %s493 = smul.addr %s490, 9
          %s494 = sadd.s32 %s492, %s493
          %s495 = smul.addr %s494, 8
          %s496 = scalar_lea.vmem %s3, %s495
        $region82: #{stft_forward.1} parent=77 // pred_fallthru
          _
      $region78: #{stft_forward.1} parent=5 // pred_fallthru
        _
    $region6: #{stft_forward.1} parent=1 // loop_footer
      %s13 = sadd.s32 1, %s9
    $region7: #{stft_forward.1} parent=1 // loop_footer_branch
      %8 = sbr.rel target = $region3
    $region8: #{stft_forward.1} parent=1 // loop_exit
      _

</llo_original>
